<compile_context>
chip_gen: v7x
topology: tpu7x:2x2x1
jax: 0.10.0
libtpu: 0.0.40
codegen_flags: <defaults>
</compile_context>

<pallas_src>
import functools

import jax
import jax.numpy as jnp
from jax.experimental import pallas as pl
from jax.experimental.pallas import tpu as pltpu


def _temporal_block_kernel(x_ref, wconv_ref, wd_ref, params_ref, o_ref, *,
                           K, dilation, W):
    """One grid step: x_ref block is (1, C_in, TL), TL a multiple of W.

    Lane axis = flattened (h, w); every length-W lane segment is an independent
    causal time series.  Tap k of the dilated causal conv needs
    x[..., w - (K-1-k)*dilation] (zero where the per-segment index is
    negative); that is a lane shift plus a (w_pos >= shift) mask.
    """
    x = x_ref[0]                                        # (C_in, TL) f32
    c_in, tl = x.shape

    # Position of each lane within its length-W time segment.  Lane-block
    # starts are multiples of W, so a local iota is sufficient.
    wpos = jax.lax.broadcasted_iota(jnp.int32, (1, tl), 1) % W

    # Build the K causally shifted taps and stack them on sublanes.
    taps = []
    for k in range(K):                                  # static, K small
        s = (K - 1 - k) * dilation
        if s == 0:
            taps.append(x)
        elif s >= W:
            taps.append(jnp.zeros_like(x))              # fully out of range
        else:
            shifted = jnp.concatenate(
                [jnp.zeros((c_in, s), x.dtype), x[:, :tl - s]], axis=1)
            taps.append(jnp.where(wpos >= s, shifted, 0.0))
    xs = jnp.concatenate(taps, axis=0)                  # (K*C_in, TL)

    # --- dilated causal conv1 as a single MXU matmul, + bias ---
    conv = jnp.dot(wconv_ref[...], xs, preferred_element_type=jnp.float32)
    conv = conv + params_ref[:, 0:1]                    # conv bias

    # --- ReLU ---
    conv = jnp.maximum(conv, 0.0)

    # --- Dropout: inference semantics -> identity ---
    # TODO(synk): training-mode stochastic dropout / batch-stat BN not implemented.

    # --- BatchNorm2d (eval), folded to per-channel scale/shift ---
    conv = conv * params_ref[:, 1:2] + params_ref[:, 2:3]

    # --- residual path: 1x1 downsample conv on the unshifted input ---
    res = jnp.dot(wd_ref[...], x, preferred_element_type=jnp.float32)
    res = res + params_ref[:, 3:4]

    # --- final ReLU, lane-dense store ---
    o_ref[0] = jnp.maximum(conv + res, 0.0).astype(o_ref.dtype)


def _pick_lane_tile(HW, W, cap=4096):
    """Lane tile: must divide HW, be a multiple of W, and be either a multiple
    of 128 or the full extent HW (BlockSpec rule)."""
    if HW <= cap:
        return HW
    start = (cap // W) * W
    for tl in range(start, 0, -W):
        if HW % tl == 0 and tl % 128 == 0:
            return tl
    return HW


def temporal_block(x, w1, b1, gamma, beta, run_mean, run_var, wd, bd, *,
                   kernel_size, stride, dilation, padding, eps=1e-5):
    assert stride == 1, "TCN temporal block uses stride 1"
    assert padding == (kernel_size - 1) * dilation, "causal TCN padding"
    N, C_in, H, W = x.shape
    C_out = w1.shape[0]
    HW = H * W

    if wd is None:                       # n_inputs == n_outputs: identity residual
        wd = jnp.eye(C_out, C_in, dtype=jnp.float32)
        bd = jnp.zeros((C_out,), jnp.float32)

    # Free relayout: NCHW -> (N, C_in, H*W).  No transpose, no pad.
    xf = x.reshape(N, C_in, HW)

    # Fold BN (eval) into per-channel scale/shift and pack all per-channel
    # vectors into one (C_out, 4) operand: [b1, scale, shift, bd].
    scale = gamma / jnp.sqrt(run_var + eps)
    shift = beta - run_mean * scale
    params = jnp.stack([b1, scale, shift, bd], axis=1).astype(jnp.float32)

    # Stack the K conv taps into one (C_out, K*C_in) weight:
    # w_conv[o, k*C_in + c] = w1[o, c, k].
    w_conv = jnp.transpose(w1, (0, 2, 1)).reshape(C_out, kernel_size * C_in)
    w_conv = w_conv.astype(jnp.float32)
    wd = wd.astype(jnp.float32)

    TL = _pick_lane_tile(HW, W)
    assert HW % TL == 0 and TL % W == 0

    kern = functools.partial(_temporal_block_kernel, K=kernel_size,
                             dilation=dilation, W=W)

    out = pl.pallas_call(
        kern,
        out_shape=jax.ShapeDtypeStruct((N, C_out, HW), x.dtype),
        grid_spec=pltpu.PrefetchScalarGridSpec(
            num_scalar_prefetch=0,
            grid=(N, HW // TL),
            in_specs=[
                pl.BlockSpec((1, C_in, TL), lambda n, l: (n, 0, l)),
                pl.BlockSpec((C_out, kernel_size * C_in), lambda n, l: (0, 0)),
                pl.BlockSpec((C_out, C_in), lambda n, l: (0, 0)),
                pl.BlockSpec((C_out, 4), lambda n, l: (0, 0)),
            ],
            out_specs=pl.BlockSpec((1, C_out, TL), lambda n, l: (n, 0, l)),
        ),
        compiler_params=pltpu.CompilerParams(
            dimension_semantics=("parallel", "parallel")),
    )(xf, w_conv, wd, params)

    # Free relayout back to NCHW.
    return out.reshape(N, C_out, H, W)


def temporal_block_reference(x, w1, b1, gamma, beta, rm, rv, wd, bd, *,
                             kernel_size, dilation, padding, eps=1e-5):
    """Pure-JAX reference with identical semantics (for verification)."""
    N, C_in, H, W = x.shape
    C_out = w1.shape[0]
    xp = jnp.pad(x, ((0, 0), (0, 0), (0, 0), (padding, 0)))
    out = jnp.zeros((N, C_out, H, W), jnp.float32)
    for k in range(kernel_size):
        xs = xp[:, :, :, k * dilation: k * dilation + W]
        out = out + jnp.einsum('oi,nihw->nohw', w1[:, :, k], xs)
    out = out + b1[None, :, None, None]
    out = jnp.maximum(out, 0.0)
    scale = gamma / jnp.sqrt(rv + eps)
    shift = beta - rm * scale
    out = out * scale[None, :, None, None] + shift[None, :, None, None]
    res = jnp.einsum('oi,nihw->nohw', wd, x) + bd[None, :, None, None]
    return jnp.maximum(out + res, 0.0)


if __name__ == "__main__":
    # Small, conv2d-consistent shapes: NCHW input, kernel (1, K) over W.
    # H*W = 128 so each grid step's store is fully lane-dense.
    N, C_in, C_out, H, W = 2, 4, 8, 8, 16
    K, stride, dilation = 3, 1, 2
    padding = (K - 1) * dilation            # causal padding, chomped on right

    key = jax.random.PRNGKey(0)
    (k_x, k_v, k_b1, k_wd, k_bd,
     k_g, k_be, k_rm, k_rv) = jax.random.split(key, 9)

    x = jax.random.normal(k_x, (N, C_in, H, W), jnp.float32)

    # weight_norm(conv1): weight = g * v / ||v|| (norm per output channel).
    v = 0.01 * jax.random.normal(k_v, (C_out, C_in, 1, K), jnp.float32)
    g = jnp.sqrt(jnp.sum(v ** 2, axis=(1, 2, 3), keepdims=True))
    w1 = (g * v / jnp.sqrt(jnp.sum(v ** 2, axis=(1, 2, 3), keepdims=True)))
    w1 = w1.reshape(C_out, C_in, K)         # squeeze the (1, K) H-kernel dim
    b1 = 0.1 * jax.random.normal(k_b1, (C_out,), jnp.float32)

    # BatchNorm2d (eval mode) with non-trivial affine / running stats.
    gamma = 1.0 + 0.1 * jax.random.normal(k_g, (C_out,), jnp.float32)
    beta = 0.1 * jax.random.normal(k_be, (C_out,), jnp.float32)
    run_mean = 0.1 * jax.random.normal(k_rm, (C_out,), jnp.float32)
    run_var = 1.0 + 0.1 * jax.random.uniform(k_rv, (C_out,), jnp.float32)

    # downsample 1x1 conv (n_inputs != n_outputs here).
    wd = 0.01 * jax.random.normal(k_wd, (C_out, C_in), jnp.float32)
    bd = 0.1 * jax.random.normal(k_bd, (C_out,), jnp.float32)

    out = temporal_block(x, w1, b1, gamma, beta, run_mean, run_var, wd, bd,
                         kernel_size=K, stride=stride, dilation=dilation,
                         padding=padding)
    out = jax.block_until_ready(out)

    ref = temporal_block_reference(x, w1, b1, gamma, beta, run_mean, run_var,
                                   wd, bd, kernel_size=K, dilation=dilation,
                                   padding=padding)
    assert out.shape == (N, C_out, H, W)
    assert jnp.allclose(out, ref, atol=1e-5, rtol=1e-5)
    print("KERNEL_OK")
</pallas_src>

<mosaic_0001>
module attributes {stable_mosaic.version = 11 : i64} {
  func.func @_temporal_block_kernel(%arg0: i32, %arg1: i32, %arg2: memref<1x4x128xf32, #tpu.memory_space<vmem>>, %arg3: memref<8x12xf32, #tpu.memory_space<vmem>>, %arg4: memref<8x4xf32, #tpu.memory_space<vmem>>, %arg5: memref<8x4xf32, #tpu.memory_space<vmem>>, %arg6: memref<1x8x128xf32, #tpu.memory_space<vmem>>) attributes {dimension_semantics = [#tpu.dimension_semantics<parallel>, #tpu.dimension_semantics<parallel>], iteration_bounds = array<i64: 2, 1>, scalar_prefetch = 0 : i64, scratch_operands = 0 : i64, tpu.core_type = #tpu.core_type<tc>, window_params = [{transform_indices = @transform_0, window_bounds = array<i64: 1, 4, 128>}, {pipeline_mode = #tpu.pipeline_mode<synchronous>, transform_indices = @transform_1, window_bounds = array<i64: 8, 12>}, {pipeline_mode = #tpu.pipeline_mode<synchronous>, transform_indices = @transform_2, window_bounds = array<i64: 8, 4>}, {pipeline_mode = #tpu.pipeline_mode<synchronous>, transform_indices = @transform_3, window_bounds = array<i64: 8, 4>}, {transform_indices = @transform_4, window_bounds = array<i64: 1, 8, 128>}]} {
    %c0 = arith.constant 0 : index
    %c0_0 = arith.constant 0 : index
    %c0_1 = arith.constant 0 : index
    %0 = vector.load %arg2[%c0, %c0_0, %c0_1] : memref<1x4x128xf32, #tpu.memory_space<vmem>>, vector<1x4x128xf32>
    %1 = vector.shape_cast %0 : vector<1x4x128xf32> to vector<4x128xf32>
    %2 = tpu.iota {dimensions = array<i32: 1>} : vector<1x128xi32>
    %c16_i32 = arith.constant 16 : i32
    %c0_i32 = arith.constant 0 : i32
    %3 = arith.cmpi eq, %c16_i32, %c0_i32 : i32
    %c1_i32 = arith.constant 1 : i32
    %4 = arith.select %3, %c1_i32, %c16_i32 : i32
    %5 = vector.broadcast %4 : i32 to vector<1x128xi32>
    %6 = arith.remsi %2, %5 : vector<1x128xi32>
    %c0_i32_2 = arith.constant 0 : i32
    %7 = vector.broadcast %c0_i32_2 : i32 to vector<1x128xi32>
    %8 = arith.cmpi ne, %6, %7 : vector<1x128xi32>
    %c0_i32_3 = arith.constant 0 : i32
    %9 = vector.broadcast %c0_i32_3 : i32 to vector<1x128xi32>
    %10 = arith.cmpi slt, %6, %9 : vector<1x128xi32>
    %c0_i32_4 = arith.constant 0 : i32
    %11 = arith.cmpi slt, %4, %c0_i32_4 : i32
    %12 = vector.broadcast %11 : i1 to vector<1x128xi1>
    %13 = vector.broadcast %12 : vector<1x128xi1> to vector<1x128xi1>
    %14 = arith.xori %10, %13 : vector<1x128xi1>
    %15 = arith.andi %14, %8 : vector<1x128xi1>
    %16 = vector.broadcast %4 : i32 to vector<1x128xi32>
    %17 = arith.addi %6, %16 : vector<1x128xi32>
    %18 = arith.select %15, %17, %6 : vector<1x128xi1>, vector<1x128xi32>
    %cst = arith.constant 0.000000e+00 : f32
    %19 = vector.broadcast %cst : f32 to vector<4x4xf32>
    %20 = vector.extract_strided_slice %1 {offsets = [0, 0], sizes = [4, 124], strides = [1, 1]} : vector<4x128xf32> to vector<4x124xf32>
    %21 = tpu.concatenate %19, %20 in 1 : vector<4x4xf32>, vector<4x124xf32> -> vector<4x128xf32>
    %c4_i32 = arith.constant 4 : i32
    %22 = vector.broadcast %c4_i32 : i32 to vector<1x128xi32>
    %23 = arith.cmpi sge, %18, %22 : vector<1x128xi32>
    %cst_5 = arith.constant 0.000000e+00 : f32
    %24 = vector.shape_cast %23 : vector<1x128xi1> to vector<1x128xi1>
    %25 = vector.broadcast %24 : vector<1x128xi1> to vector<4x128xi1>
    %26 = vector.broadcast %cst_5 : f32 to vector<4x128xf32>
    %27 = arith.select %25, %21, %26 : vector<4x128xi1>, vector<4x128xf32>
    %cst_6 = arith.constant 0.000000e+00 : f32
    %28 = vector.broadcast %cst_6 : f32 to vector<4x2xf32>
    %29 = vector.extract_strided_slice %1 {offsets = [0, 0], sizes = [4, 126], strides = [1, 1]} : vector<4x128xf32> to vector<4x126xf32>
    %30 = tpu.concatenate %28, %29 in 1 : vector<4x2xf32>, vector<4x126xf32> -> vector<4x128xf32>
    %c2_i32 = arith.constant 2 : i32
    %31 = vector.broadcast %c2_i32 : i32 to vector<1x128xi32>
    %32 = arith.cmpi sge, %18, %31 : vector<1x128xi32>
    %cst_7 = arith.constant 0.000000e+00 : f32
    %33 = vector.shape_cast %32 : vector<1x128xi1> to vector<1x128xi1>
    %34 = vector.broadcast %33 : vector<1x128xi1> to vector<4x128xi1>
    %35 = vector.broadcast %cst_7 : f32 to vector<4x128xf32>
    %36 = arith.select %34, %30, %35 : vector<4x128xi1>, vector<4x128xf32>
    %37 = tpu.concatenate %27, %36, %1 in 0 : vector<4x128xf32>, vector<4x128xf32>, vector<4x128xf32> -> vector<12x128xf32>
    %c0_8 = arith.constant 0 : index
    %c0_9 = arith.constant 0 : index
    %38 = vector.load %arg3[%c0_8, %c0_9] : memref<8x12xf32, #tpu.memory_space<vmem>>, vector<8x12xf32>
    %cst_10 = arith.constant dense<0.000000e+00> : vector<8x128xf32>
    %39 = tpu.matmul %38, %37, %cst_10 {dimension_numbers = #tpu.dot_dimension_numbers<[1], [0], [0], [1], [0, 0, 1, 1], [], []>} : vector<8x12xf32>, vector<12x128xf32>, vector<8x128xf32> -> vector<8x128xf32>
    %c0_11 = arith.constant 0 : index
    %c0_12 = arith.constant 0 : index
    %40 = vector.load %arg5[%c0_11, %c0_12] : memref<8x4xf32, #tpu.memory_space<vmem>>, vector<8x1xf32>
    %41 = vector.broadcast %40 : vector<8x1xf32> to vector<8x128xf32>
    %42 = arith.addf %39, %41 : vector<8x128xf32>
    %cst_13 = arith.constant 0.000000e+00 : f32
    %43 = vector.broadcast %cst_13 : f32 to vector<8x128xf32>
    %44 = arith.maximumf %42, %43 : vector<8x128xf32>
    %c0_14 = arith.constant 0 : index
    %c1 = arith.constant 1 : index
    %45 = vector.load %arg5[%c0_14, %c1] : memref<8x4xf32, #tpu.memory_space<vmem>>, vector<8x1xf32>
    %46 = vector.broadcast %45 : vector<8x1xf32> to vector<8x128xf32>
    %47 = arith.mulf %44, %46 : vector<8x128xf32>
    %c0_15 = arith.constant 0 : index
    %c2 = arith.constant 2 : index
    %48 = vector.load %arg5[%c0_15, %c2] : memref<8x4xf32, #tpu.memory_space<vmem>>, vector<8x1xf32>
    %49 = vector.broadcast %48 : vector<8x1xf32> to vector<8x128xf32>
    %50 = arith.addf %47, %49 : vector<8x128xf32>
    %c0_16 = arith.constant 0 : index
    %c0_17 = arith.constant 0 : index
    %51 = vector.load %arg4[%c0_16, %c0_17] : memref<8x4xf32, #tpu.memory_space<vmem>>, vector<8x4xf32>
    %cst_18 = arith.constant dense<0.000000e+00> : vector<8x128xf32>
    %52 = tpu.matmul %51, %1, %cst_18 {dimension_numbers = #tpu.dot_dimension_numbers<[1], [0], [0], [1], [0, 0, 1, 1], [], []>} : vector<8x4xf32>, vector<4x128xf32>, vector<8x128xf32> -> vector<8x128xf32>
    %c0_19 = arith.constant 0 : index
    %c3 = arith.constant 3 : index
    %53 = vector.load %arg5[%c0_19, %c3] : memref<8x4xf32, #tpu.memory_space<vmem>>, vector<8x1xf32>
    %54 = vector.broadcast %53 : vector<8x1xf32> to vector<8x128xf32>
    %55 = arith.addf %52, %54 : vector<8x128xf32>
    %56 = arith.addf %50, %55 : vector<8x128xf32>
    %cst_20 = arith.constant 0.000000e+00 : f32
    %57 = vector.broadcast %cst_20 : f32 to vector<8x128xf32>
    %58 = arith.maximumf %56, %57 : vector<8x128xf32>
    %c0_21 = arith.constant 0 : index
    %c0_22 = arith.constant 0 : index
    %c0_23 = arith.constant 0 : index
    %59 = vector.load %arg6[%c0_21, %c0_22, %c0_23] : memref<1x8x128xf32, #tpu.memory_space<vmem>>, vector<1x8x128xf32>
    %60 = vector.shape_cast %59 : vector<1x8x128xf32> to vector<8x128xf32>
    %61 = vector.shape_cast %58 : vector<8x128xf32> to vector<1x8x128xf32>
    tpu.vector_store %arg6[%c0_21, %c0_22, %c0_23], %61 {strides = array<i32>} : memref<1x8x128xf32, #tpu.memory_space<vmem>>, vector<1x8x128xf32>,
    return
  }
  func.func @transform_0(%arg0: i32, %arg1: i32) -> (i32, i32, i32) {
    %c0_i32 = arith.constant 0 : i32
    %c0_i32_0 = arith.constant 0 : i32
    return %arg0, %c0_i32, %arg1 : i32, i32, i32
  }
  func.func @transform_1(%arg0: i32, %arg1: i32) -> (i32, i32) {
    %c0_i32 = arith.constant 0 : i32
    %c0_i32_0 = arith.constant 0 : i32
    %c0_i32_1 = arith.constant 0 : i32
    return %c0_i32, %c0_i32_0 : i32, i32
  }
  func.func @transform_2(%arg0: i32, %arg1: i32) -> (i32, i32) {
    %c0_i32 = arith.constant 0 : i32
    %c0_i32_0 = arith.constant 0 : i32
    %c0_i32_1 = arith.constant 0 : i32
    return %c0_i32, %c0_i32_0 : i32, i32
  }
  func.func @transform_3(%arg0: i32, %arg1: i32) -> (i32, i32) {
    %c0_i32 = arith.constant 0 : i32
    %c0_i32_0 = arith.constant 0 : i32
    %c0_i32_1 = arith.constant 0 : i32
    return %c0_i32, %c0_i32_0 : i32, i32
  }
  func.func @transform_4(%arg0: i32, %arg1: i32) -> (i32, i32, i32) {
    %c0_i32 = arith.constant 0 : i32
    %c0_i32_0 = arith.constant 0 : i32
    return %arg0, %c0_i32, %arg1 : i32, i32, i32
  }
}

</mosaic_0001>

<llo_original>
// kernel: tpu_custom_call.1
$region0: #{tpu_custom_call.1}
  #allocation0 [shape = 'u32[]', space=smem, size = 0x4, offset = 0x4, fixed_abs, tag = 'smem constant byte address 0x4 - core index']
  #allocation1 [shape = 'u32[144,128]{1,0:T(1,128)}', space=vmem, size = 0x12000, scoped, tag = 'internal scratch']
  %s0 = inlined_call_operand.vmem [shape: f32[2,4,128], index: 0, kind: input, shape index: {}]
  %s1 = inlined_call_operand.vmem [shape: f32[8,12], index: 1, kind: input, shape index: {}]
  %s2 = inlined_call_operand.vmem [shape: f32[8,4], index: 2, kind: input, shape index: {}]
  %s3 = inlined_call_operand.vmem [shape: f32[8,4], index: 3, kind: input, shape index: {}]
  %s4 = inlined_call_operand.hbm [shape: f32[2,8,128], index: 4, kind: output, shape index: {}]
  %s5 = sld [smem:[#allocation0]]
  $region49: #{tpu_custom_call.1} parent=0
    _
  %s7 = ssub.s32 1, %s5
  %s8 = scalar_select 0, %s7, %s5
  $region1: #{tpu_custom_call.1} parent=0
    #allocation2 [shape = 'u8[8192]{0}', space=vmem, size = 0x2000, scoped, tag = 'output window, operand 0']
    #allocation3 [shape = 's32[2]{0}', space=sflag, size = 0x8, scoped, tag = 'scoped memory for tpu_custom_call.1']
    %9 = vsyncpa [#allocation3], 0
    %s10 = scalar_lea.sflag [#allocation3], 1
    %11 = vsyncpa %s10, 0
    loop: start=0, step=1, limit=4
    $region2: #{tpu_custom_call.1} parent=1 // loop_pre_header
      _
    $region3: #{tpu_custom_call.1} parent=1 // loop_header
      %s13 = sphi 0, %s17
      %p14 = scmp.ge.s32.totalorder %s13, 4
      %s20 = sphi 0, %s32
      %s21 = sphi 0, %s28
      %s22 = sphi 0, %s20
      %s23 = sphi 0, %s21
      %s24 = sphi 0, %s22
      %s25 = sphi 0, %s23
      %s37 = sphi 0, %s39
      %s40 = sphi 0, %s37
      %s41 = sphi 0, %s40
      %s57 = sphi 0, %s41
      %s61 = sphi 0, %s61
      %s63 = sphi 0, %s61
      %s64 = sphi 0, %s63
      %s78 = sphi 0, %s64
      %s82 = sphi 0, %s82
      %s84 = sphi 0, %s82
      %s85 = sphi 0, %s84
      %s99 = sphi 0, %s85
      %s103 = sphi 0, %s103
      %s105 = sphi 0, %s103
      %s106 = sphi 0, %s105
      %s120 = sphi 0, %s106
      %s128 = sphi 0, %s130
      %s131 = sphi 0, %s128
      %s132 = sphi 0, %s131
      %s148 = sphi 0, %s132
    $region4: #{tpu_custom_call.1} parent=1 // loop_header_branch
      %16 = sbr.rel (%p14) target = $region8
    $region5: #{tpu_custom_call.1} parent=1 // loop_body
      %s18 = ssub.s32 %s13, 1
      %s19 = ssub.s32 %s13, 2
      %s26 = sadd.s32 1, %s21
      %p27 = scmp.ge.s32.totalorder %s26, 1
      %s28 = scalar_select %p27, 0, %s26
      %s29 = sadd.s32 1, %s20
      %s30 = scalar_select %p27, %s29, %s20
      %p31 = scmp.ge.s32.totalorder %s30, 2
      %s32 = scalar_select %p31, 0, %s30
      %s33 = ssub.s32 %s20, %s32
      %s34 = ssub.s32 %s21, %s28
      %s35 = sor.u32 %s33, %s34
      %p36 = scmp.eq.s32.totalorder %s35, 0
      %s38 = sadd.s32 %s37, 1
      %s39 = scalar_select %p36, %s37, %s38
      %p42 = pneg %p36
      %p43 = scmp.eq.s32.totalorder %s13, 1
      %p44 = por %p42, %p43
      %p45 = scmp.ne.s32.totalorder %s37, %s40
      %p46 = scmp.eq.s32.totalorder %s13, 0
      %p47 = por %p45, %p46
      %p48 = scmp.ne.s32.totalorder %s37, %s40
      %p49 = scmp.eq.s32.totalorder %s18, 1
      %p50 = por %p48, %p49
      %p51 = scmp.ne.s32.totalorder %s40, %s41
      %p52 = scmp.eq.s32.totalorder %s18, 0
      %p53 = por %p51, %p52
      %p54 = scmp.ne.s32.totalorder %s40, %s41
      %p55 = scmp.eq.s32.totalorder %s19, 1
      %p56 = por %p54, %p55
      %p58 = scmp.ne.s32.totalorder %s41, %s57
      %p59 = scmp.eq.s32.totalorder %s19, 0
      %p60 = por %p58, %p59
      %s62 = sadd.s32 %s61, 1
      %p65 = scmp.eq.s32.totalorder %s13, 1
      %p66 = scmp.ne.s32.totalorder %s61, %s63
      %p67 = scmp.eq.s32.totalorder %s13, 0
      %p68 = por %p66, %p67
      %p69 = scmp.ne.s32.totalorder %s61, %s63
      %p70 = scmp.eq.s32.totalorder %s18, 1
      %p71 = por %p69, %p70
      %p72 = scmp.ne.s32.totalorder %s63, %s64
      %p73 = scmp.eq.s32.totalorder %s18, 0
      %p74 = por %p72, %p73
      %p75 = scmp.ne.s32.totalorder %s63, %s64
      %p76 = scmp.eq.s32.totalorder %s19, 1
      %p77 = por %p75, %p76
      %p79 = scmp.ne.s32.totalorder %s64, %s78
      %p80 = scmp.eq.s32.totalorder %s19, 0
      %p81 = por %p79, %p80
      %s83 = sadd.s32 %s82, 1
      %p86 = scmp.eq.s32.totalorder %s13, 1
      %p87 = scmp.ne.s32.totalorder %s82, %s84
      %p88 = scmp.eq.s32.totalorder %s13, 0
      %p89 = por %p87, %p88
      %p90 = scmp.ne.s32.totalorder %s82, %s84
      %p91 = scmp.eq.s32.totalorder %s18, 1
      %p92 = por %p90, %p91
      %p93 = scmp.ne.s32.totalorder %s84, %s85
      %p94 = scmp.eq.s32.totalorder %s18, 0
      %p95 = por %p93, %p94
      %p96 = scmp.ne.s32.totalorder %s84, %s85
      %p97 = scmp.eq.s32.totalorder %s19, 1
      %p98 = por %p96, %p97
      %p100 = scmp.ne.s32.totalorder %s85, %s99
      %p101 = scmp.eq.s32.totalorder %s19, 0
      %p102 = por %p100, %p101
      %s104 = sadd.s32 %s103, 1
      %p107 = scmp.eq.s32.totalorder %s13, 1
      %p108 = scmp.ne.s32.totalorder %s103, %s105
      %p109 = scmp.eq.s32.totalorder %s13, 0
      %p110 = por %p108, %p109
      %p111 = scmp.ne.s32.totalorder %s103, %s105
      %p112 = scmp.eq.s32.totalorder %s18, 1
      %p113 = por %p111, %p112
      %p114 = scmp.ne.s32.totalorder %s105, %s106
      %p115 = scmp.eq.s32.totalorder %s18, 0
      %p116 = por %p114, %p115
      %p117 = scmp.ne.s32.totalorder %s105, %s106
      %p118 = scmp.eq.s32.totalorder %s19, 1
      %p119 = por %p117, %p118
      %p121 = scmp.ne.s32.totalorder %s106, %s120
      %p122 = scmp.eq.s32.totalorder %s19, 0
      %p123 = por %p121, %p122
      %s124 = ssub.s32 %s20, %s32
      %s125 = ssub.s32 %s21, %s28
      %s126 = sor.u32 %s124, %s125
      %p127 = scmp.eq.s32.totalorder %s126, 0
      %s129 = sadd.s32 %s128, 1
      %s130 = scalar_select %p127, %s128, %s129
      %p133 = pneg %p127
      %p134 = scmp.eq.s32.totalorder %s13, 1
      %p135 = por %p133, %p134
      %p136 = scmp.ne.s32.totalorder %s128, %s131
      %p137 = scmp.eq.s32.totalorder %s13, 0
      %p138 = por %p136, %p137
      %p139 = scmp.ne.s32.totalorder %s128, %s131
      %p140 = scmp.eq.s32.totalorder %s18, 1
      %p141 = por %p139, %p140
      %p142 = scmp.ne.s32.totalorder %s131, %s132
      %p143 = scmp.eq.s32.totalorder %s18, 0
      %p144 = por %p142, %p143
      %p145 = scmp.ne.s32.totalorder %s131, %s132
      %p146 = scmp.eq.s32.totalorder %s19, 1
      %p147 = por %p145, %p146
      %p149 = scmp.ne.s32.totalorder %s132, %s148
      %p150 = scmp.eq.s32.totalorder %s19, 0
      %p151 = por %p149, %p150
      %p152 = scmp.le.s32.totalorder 1, %s13
      %p153 = scmp.lt.s32.totalorder %s13, 3
      %p154 = pnand %p152, %p153
      %p155 = pneg %p154
      // Predicated region
      $region9: #{tpu_custom_call.1} parent=5 // pred_check
        _
      $region10: #{tpu_custom_call.1} parent=5 // pred_check_branch
        %157 = sbr.rel (%p154) target = $region12
      $region11: #{tpu_custom_call.1} parent=5 // pred_region
        %s158 = ssub.s32 %s13, 1
        // Predicated region
        $region13: #{tpu_custom_call.1} parent=11 // pred_check
          %p159 = pneg %p74
        $region14: #{tpu_custom_call.1} parent=11 // pred_check_branch
          %161 = sbr.rel (%p159) target = $region16
        $region15: #{tpu_custom_call.1} parent=11 // pred_region
          _
        $region16: #{tpu_custom_call.1} parent=11 // pred_fallthru
          _
        // Predicated region
        $region17: #{tpu_custom_call.1} parent=11 // pred_check
          %p162 = pneg %p95
        $region18: #{tpu_custom_call.1} parent=11 // pred_check_branch
          %164 = sbr.rel (%p162) target = $region20
        $region19: #{tpu_custom_call.1} parent=11 // pred_region
          _
        $region20: #{tpu_custom_call.1} parent=11 // pred_fallthru
          _
        // Predicated region
        $region21: #{tpu_custom_call.1} parent=11 // pred_check
          %p165 = pneg %p116
        $region22: #{tpu_custom_call.1} parent=11 // pred_check_branch
          %167 = sbr.rel (%p165) target = $region24
        $region23: #{tpu_custom_call.1} parent=11 // pred_region
          _
        $region24: #{tpu_custom_call.1} parent=11 // pred_fallthru
          _
      $region12: #{tpu_custom_call.1} parent=5 // pred_fallthru
        _
      %p168 = scmp.lt.s32.totalorder %s13, 2
      // Predicated region
      $region25: #{tpu_custom_call.1} parent=5 // pred_check
        %p169 = pneg %p168
      $region26: #{tpu_custom_call.1} parent=5 // pred_check_branch
        %171 = sbr.rel (%p169) target = $region28
      $region27: #{tpu_custom_call.1} parent=5 // pred_region
        // Predicated region
        $region29: #{tpu_custom_call.1} parent=27 // pred_check
          %p172 = pneg %p47
        $region30: #{tpu_custom_call.1} parent=27 // pred_check_branch
          %174 = sbr.rel (%p172) target = $region32
        $region31: #{tpu_custom_call.1} parent=27 // pred_region
          %p175 = scmp.lt.s32.totalorder %s20, 1
          %s176 = scalar_select %p175, %s20, 1
          %p177 = scmp.lt.s32.totalorder %s21, 0
          %s178 = scalar_select %p177, %s21, 0
          %s179 = sadd.s32 %s178, %s176
          %s180 = smul.addr %s179, 4
          %s181 = scalar_lea.vmem %s0, %s180
        $region32: #{tpu_custom_call.1} parent=27 // pred_fallthru
          _
      $region28: #{tpu_custom_call.1} parent=5 // pred_fallthru
        _
      %p182 = scmp.le.s32.totalorder 1, %s13
      %p183 = scmp.lt.s32.totalorder %s13, 3
      %p184 = pnand %p182, %p183
      %p185 = pneg %p184
      // Predicated region
      $region33: #{tpu_custom_call.1} parent=5 // pred_check
        _
      $region34: #{tpu_custom_call.1} parent=5 // pred_check_branch
        %187 = sbr.rel (%p184) target = $region36
      $region35: #{tpu_custom_call.1} parent=5 // pred_region
        %s188 = ssub.s32 %s13, 1
        %p189 = scmp.lt.s32.totalorder %s22, 1
        %s190 = scalar_select %p189, %s22, 1
        %p191 = scmp.lt.s32.totalorder %s23, 0
        %s192 = scalar_select %p191, %s23, 0
        %s193 = sadd.s32 %s192, %s190
        %s194 = smul.addr %s193, 4
        %s195 = scalar_lea.vmem %s0, %s194
        %p196 = pneg %p53
        %p197 = pneg %p50
        %p198 = pneg %p74
        %p199 = pneg %p71
        %p200 = pneg %p95
        %p201 = pneg %p92
        %p202 = pneg %p116
        %p203 = pneg %p113
        %p204 = pneg %p144
        %p205 = pneg %p141
        %s206 = sand.u32 %s131, 1
        %s207 = scalar_lea.sflag [#allocation3], %s206
        %s208 = sand.u32 %s131, 1
        %s209 = smul.addr %s208, 8
        %s210 = scalar_lea.vmem [#allocation2], %s209
        %p211 = scmp.lt.s32.totalorder %s22, 1
        %s212 = scalar_select %p211, %s22, 1
        %p213 = scmp.lt.s32.totalorder %s23, 0
        %s214 = scalar_select %p213, %s23, 0
        %s215 = sadd.s32 %s214, %s212
        %s216 = smul.addr %s215, 4
        %s217 = scalar_lea.vmem %s0, %s216
        %v218 = vld [vmem:[%s217] sm:$0xf]
        %v219 = vlaneseq
        %v220 = vand.u32 %v219, 127
        %vm221 = vcmp.lt.s32.totalorder %v220, 0
        %v222 = vsub.s32 0, %v220
        %v223 = vsel %vm221, %v222, %v220
        %v224 = vshrl.u32 %v223, 4
        %v225 = vand.u32 %v223, 15
        %v226 = vsub.s32 0, %v225
        %v227 = vsel %vm221, %v226, %v225
        %vm228 = vcmp.ne.s32.totalorder %v227, 0
        %vm229 = vcmp.lt.s32.totalorder %v227, 0
        %vm230 = vmand %vm229, %vm228
        %v231 = vadd.s32 %v227, 16
        %v232 = vsel %vm230, %v231, %v227
        %234 = vrot.lane.b32.xlu0 %v218, 4
        %v235 = vpop.permute.xlu0 %234
        %vm237 = vcmask 31744
        %v238 = vsel %vm237, 0.0, %v235
        %vm239 = vcmp.ge.s32.totalorder %v232, 4
        %v240 = vsel %vm239, 1, 0
        %vm241 = vcmp.eq.s32.totalorder %v240, 1
        %v242 = vsel %vm241, %v238, 0.0
        %243 = vrot.lane.b32.xlu0 %v218, 2
        %v244 = vpop.permute.xlu0 %243
        %vm246 = vcmask 15360
        %v247 = vsel %vm246, 0.0, %v244
        %vm248 = vcmp.ge.s32.totalorder %v232, 2
        %v249 = vsel %vm248, 1, 0
        %vm250 = vcmp.eq.s32.totalorder %v249, 1
        %v251 = vsel %vm250, %v247, 0.0
        %v253 = vrot.slane %v251, 4
        %vm255 = vcmask 1043456
        %v256 = vsel %vm255, %v242, %v253
        %v257 = vld [vmem:[%s1] sm:$0xff]
        %v258 = vld [vmem:[%s3] sm:$0xff]
        %260 = vset.pattern.permute.xlu0 0
        %261 = vperm.xlu0 %260, %v258
        %v262 = vpop.permute.xlu0 %261
        %vm264 = vcmask 97280
        %v266 = vsel %vm264, %v257, 0
        %v268 = vsel %vm255, %v218, 0
        %270 = vmatprep.subr.mxu0 0.0
        %271 = vmatpush1.msra.mxu0 %v256
        %272 = vmatprep.subr.mxu0 0.0
        %273 = vmatpush1.msra.mxu0 %v268
        %274 = vmatprep.subr.mxu0 0.0
        %275 = vmatpush1.msra.mxu0 0.0
        %276 = vmatprep.subr.mxu0 0.0
        %277 = vmatpush1.msra.mxu0 0.0
        %278 = vmatprep.subr.mxu0 0.0
        %279 = vmatpush1.msra.mxu0 0.0
        %280 = vmatprep.subr.mxu0 0.0
        %281 = vmatpush1.msra.mxu0 0.0
        %282 = vmatprep.subr.mxu0 0.0
        %283 = vmatpush1.msra.mxu0 0.0
        %284 = vmatprep.subr.mxu0 0.0
        %285 = vmatpush1.msra.mxu0 0.0
        %286 = vmatprep.subr.mxu0 0.0
        %287 = vmatpush1.msra.mxu0 0.0
        %288 = vmatprep.subr.mxu0 0.0
        %289 = vmatpush1.msra.mxu0 0.0
        %290 = vmatprep.subr.mxu0 0.0
        %291 = vmatpush1.msra.mxu0 0.0
        %292 = vmatprep.subr.mxu0 0.0
        %293 = vmatpush1.msra.mxu0 0.0
        %294 = vmatprep.subr.mxu0 0.0
        %295 = vmatpush1.msra.mxu0 0.0
        %296 = vmatprep.subr.mxu0 0.0
        %297 = vmatpush1.msra.mxu0 0.0
        %298 = vmatprep.subr.mxu0 0.0
        %299 = vmatpush1.msra.mxu0 0.0
        %300 = vmatprep.subr.mxu0 0.0
        %301 = vmatpush1.msra.mxu0 0.0
        %302 = vmatprep.subr.mxu0 0.0
        %303 = vmatpush1.msra.mxu0 0.0
        %304 = vmatprep.subr.mxu0 0.0
        %305 = vmatpush1.msra.mxu0 0.0
        %306 = vmatprep.subr.mxu0 0.0
        %307 = vmatpush1.msra.mxu0 0.0
        %308 = vmatprep.subr.mxu0 0.0
        %309 = vmatpush1.msra.mxu0 0.0
        %310 = vmatprep.subr.mxu0 0.0
        %311 = vmatpush1.msra.mxu0 0.0
        %312 = vmatprep.subr.mxu0 0.0
        %313 = vmatpush1.msra.mxu0 0.0
        %314 = vmatprep.subr.mxu0 0.0
        %315 = vmatpush1.msra.mxu0 0.0
        %316 = vmatprep.subr.mxu0 0.0
        %317 = vmatpush1.msra.mxu0 0.0
        %318 = vmatprep.subr.mxu0 0.0
        %319 = vmatpush1.msra.mxu0 0.0
        %320 = vmatprep.subr.mxu0 0.0
        %321 = vmatpush1.msra.mxu0 0.0
        %322 = vmatprep.subr.mxu0 0.0
        %323 = vmatpush1.msra.mxu0 0.0
        %324 = vmatprep.subr.mxu0 0.0
        %325 = vmatpush1.msra.mxu0 0.0
        %326 = vmatprep.subr.mxu0 0.0
        %327 = vmatpush1.msra.mxu0 0.0
        %328 = vmatprep.subr.mxu0 0.0
        %329 = vmatpush1.msra.mxu0 0.0
        %330 = vmatprep.subr.mxu0 0.0
        %331 = vmatpush1.msra.mxu0 0.0
        %332 = vmatprep.subr.mxu0 0.0
        %333 = vmatpush1.msra.mxu0 0.0
        %334 = vmatprep.mubr.f32.mxu0 0.0
        %335 = vmatmul.mubr.f32.gmra.mrb[0].mxu0 %v266
        %v336 = vpop.f32.mrb[0].mxu0
        %v337 = vadd.f32 %v262, %v336
        %v338 = vpop.f32.mrb[0].mxu0
        %339 = vdwg.mxu0
        %v340 = vmax.f32 %v337, 0.0
        %341 = vset.pattern.permute.xlu0 1
        %342 = vperm.xlu0 %341, %v258
        %v343 = vpop.permute.xlu0 %342
        %v345 = vmul.f32 %v340, %v343
        %346 = vset.pattern.permute.xlu0 2
        %347 = vperm.xlu0 %346, %v258
        %v348 = vpop.permute.xlu0 %347
        %v350 = vadd.f32 %v345, %v348
        %v351 = vld [vmem:[%s2] sm:$0xff]
        %352 = vset.pattern.permute.xlu0 3
        %353 = vperm.xlu0 %352, %v258
        %v354 = vpop.permute.xlu0 %353
        %v357 = vsel %vm237, %v351, 0
        %359 = vmatprep.subr.mxu0 0.0
        %360 = vmatpush1.msra.mxu0 %v268
        %361 = vmatprep.subr.mxu0 0.0
        %362 = vmatpush1.msra.mxu0 0.0
        %363 = vmatprep.subr.mxu0 0.0
        %364 = vmatpush1.msra.mxu0 0.0
        %365 = vmatprep.subr.mxu0 0.0
        %366 = vmatpush1.msra.mxu0 0.0
        %367 = vmatprep.subr.mxu0 0.0
        %368 = vmatpush1.msra.mxu0 0.0
        %369 = vmatprep.subr.mxu0 0.0
        %370 = vmatpush1.msra.mxu0 0.0
        %371 = vmatprep.subr.mxu0 0.0
        %372 = vmatpush1.msra.mxu0 0.0
        %373 = vmatprep.subr.mxu0 0.0
        %374 = vmatpush1.msra.mxu0 0.0
        %375 = vmatprep.subr.mxu0 0.0
        %376 = vmatpush1.msra.mxu0 0.0
        %377 = vmatprep.subr.mxu0 0.0
        %378 = vmatpush1.msra.mxu0 0.0
        %379 = vmatprep.subr.mxu0 0.0
        %380 = vmatpush1.msra.mxu0 0.0
        %381 = vmatprep.subr.mxu0 0.0
        %382 = vmatpush1.msra.mxu0 0.0
        %383 = vmatprep.subr.mxu0 0.0
        %384 = vmatpush1.msra.mxu0 0.0
        %385 = vmatprep.subr.mxu0 0.0
        %386 = vmatpush1.msra.mxu0 0.0
        %387 = vmatprep.subr.mxu0 0.0
        %388 = vmatpush1.msra.mxu0 0.0
        %389 = vmatprep.subr.mxu0 0.0
        %390 = vmatpush1.msra.mxu0 0.0
        %391 = vmatprep.subr.mxu0 0.0
        %392 = vmatpush1.msra.mxu0 0.0
        %393 = vmatprep.subr.mxu0 0.0
        %394 = vmatpush1.msra.mxu0 0.0
        %395 = vmatprep.subr.mxu0 0.0
        %396 = vmatpush1.msra.mxu0 0.0
        %397 = vmatprep.subr.mxu0 0.0
        %398 = vmatpush1.msra.mxu0 0.0
        %399 = vmatprep.subr.mxu0 0.0
        %400 = vmatpush1.msra.mxu0 0.0
        %401 = vmatprep.subr.mxu0 0.0
        %402 = vmatpush1.msra.mxu0 0.0
        %403 = vmatprep.subr.mxu0 0.0
        %404 = vmatpush1.msra.mxu0 0.0
        %405 = vmatprep.subr.mxu0 0.0
        %406 = vmatpush1.msra.mxu0 0.0
        %407 = vmatprep.subr.mxu0 0.0
        %408 = vmatpush1.msra.mxu0 0.0
        %409 = vmatprep.subr.mxu0 0.0
        %410 = vmatpush1.msra.mxu0 0.0
        %411 = vmatprep.subr.mxu0 0.0
        %412 = vmatpush1.msra.mxu0 0.0
        %413 = vmatprep.subr.mxu0 0.0
        %414 = vmatpush1.msra.mxu0 0.0
        %415 = vmatprep.subr.mxu0 0.0
        %416 = vmatpush1.msra.mxu0 0.0
        %417 = vmatprep.subr.mxu0 0.0
        %418 = vmatpush1.msra.mxu0 0.0
        %419 = vmatprep.subr.mxu0 0.0
        %420 = vmatpush1.msra.mxu0 0.0
        %421 = vmatprep.subr.mxu0 0.0
        %422 = vmatpush1.msra.mxu0 0.0
        %423 = vmatprep.mubr.f32.mxu0 0.0
        %424 = vmatmul.mubr.f32.gmra.mrb[0].mxu0 %v357
        %v425 = vpop.f32.mrb[0].mxu0
        %v426 = vadd.f32 %v354, %v425
        %v427 = vpop.f32.mrb[0].mxu0
        %428 = vdwg.mxu0
        %v429 = vadd.f32 %v350, %v426
        %v430 = vmax.f32 %v429, 0.0
        %431 = vst [vmem:[%s210] sm:$0xff] %v430
        %s432 = sand.u32 %s131, 1
        %s433 = scalar_lea.sflag [#allocation3], %s432
        %s434 = sand.u32 %s131, 1
        %s435 = smul.addr %s434, 8
        %s436 = scalar_lea.vmem [#allocation2], %s435
        // Predicated region
        $region37: #{tpu_custom_call.1} parent=35 // pred_check
          %p437 = pneg %p141
        $region38: #{tpu_custom_call.1} parent=35 // pred_check_branch
          %439 = sbr.rel (%p437) target = $region40
        $region39: #{tpu_custom_call.1} parent=35 // pred_region
          %s441 = ssub.s32 128, 128
          %442 = vsyncadd %s433, %s441
          %s443 = sadd.s32 %s23, %s22
          %s444 = smul.addr %s443, 128
          %s445 = scalar_lea.hbm %s4, %s444
          %s447 = sshll.u32 %s436, 4
          %s448 = int_to_ptr.vmem [resolvable:$true] %s447
          %450 = dma.vmem_to_hbm [thread:$0]  %s448, 128, %s445, %s433
        $region40: #{tpu_custom_call.1} parent=35 // pred_fallthru
          _
      $region36: #{tpu_custom_call.1} parent=5 // pred_fallthru
        _
      %p451 = scmp.le.s32.totalorder 2, %s13
      // Predicated region
      $region41: #{tpu_custom_call.1} parent=5 // pred_check
        %p452 = pneg %p451
      $region42: #{tpu_custom_call.1} parent=5 // pred_check_branch
        %454 = sbr.rel (%p452) target = $region44
      $region43: #{tpu_custom_call.1} parent=5 // pred_region
        %s455 = ssub.s32 %s13, 2
        // Predicated region
        $region45: #{tpu_custom_call.1} parent=43 // pred_check
          %p456 = pneg %p147
        $region46: #{tpu_custom_call.1} parent=43 // pred_check_branch
          %458 = sbr.rel (%p456) target = $region48
        $region47: #{tpu_custom_call.1} parent=43 // pred_region
          %s459 = sand.u32 %s132, 1
          %s460 = scalar_lea.sflag [#allocation3], %s459
          %s461 = sand.u32 %s132, 1
          %s462 = smul.addr %s461, 8
          %s463 = scalar_lea.vmem [#allocation2], %s462
          %464 = dma.done %s460, 128
        $region48: #{tpu_custom_call.1} parent=43 // pred_fallthru
          _
      $region44: #{tpu_custom_call.1} parent=5 // pred_fallthru
        _
    $region6: #{tpu_custom_call.1} parent=1 // loop_footer
      %s17 = sadd.s32 1, %s13
    $region7: #{tpu_custom_call.1} parent=1 // loop_footer_branch
      %12 = sbr.rel target = $region3
    $region8: #{tpu_custom_call.1} parent=1 // loop_exit
      _
    %465 = vsyncpa [#allocation3], 1
    %s466 = scalar_lea.sflag [#allocation3], 1
    %467 = vsyncpa %s466, 1

</llo_original>
